<compile_context>
chip_gen: v7x
topology: tpu7x:2x2x1
jax: 0.10.0
libtpu: 0.0.40
codegen_flags: <defaults>
</compile_context>

<pallas_src>
import functools
import math

import jax
import jax.numpy as jnp
from jax.experimental import pallas as pl
from jax.experimental.pallas import tpu as pltpu

LANE = 128


def _round_up(x, m):
    return ((x + m - 1) // m) * m


def _hash32(x):
    """SplitMix32-style finalizer on uint32 (VPU int ops only)."""
    x = x ^ (x >> 16)
    x = x * jnp.uint32(0x7FEB352D)
    x = x ^ (x >> 15)
    x = x * jnp.uint32(0x846CA68B)
    x = x ^ (x >> 16)
    return x


def _dropout(x, p, seed_u32, layer_id, row_base_u32):
    """Inverted dropout with a stateless counter-based hash PRNG.

    x: f32 (rows, cols).  p is a Python float (static).  seed_u32 / row_base_u32 are
    traced uint32 scalars; layer_id is a Python int.
    """
    if p <= 0.0:  # trace-time skip: no RNG work at all when dropout is disabled
        return x
    keep = 1.0 - p
    rows, cols = x.shape
    r = jax.lax.broadcasted_iota(jnp.int32, (rows, cols), 0).astype(jnp.uint32)
    c = jax.lax.broadcasted_iota(jnp.int32, (rows, cols), 1).astype(jnp.uint32)
    r = r + row_base_u32                              # global row index (tile offset)
    key = (seed_u32 * jnp.uint32(0x9E3779B9)
           + jnp.uint32(((layer_id + 1) * 0x85EBCA77) & 0xFFFFFFFF))
    bits = _hash32((r * jnp.uint32(0x01000193) + c) ^ key)
    # integer threshold compare in 24-bit space (signed-safe on every backend)
    thresh = int(min(round(keep * (1 << 24)), (1 << 24)))
    mask = (bits >> 8).astype(jnp.int32) < jnp.int32(thresh)
    return jnp.where(mask, x * (1.0 / keep), 0.0)


def mlp_kernel(seed_ref,
               x_ref,
               w0_ref, b0_ref,
               w1_ref, b1_ref,
               w2_ref, b2_ref,
               w3_ref, b3_ref,
               o_ref,
               *, p, tile_rows):
    tile = pl.program_id(0)
    seed_u32 = seed_ref[0].astype(jnp.uint32)
    row_base = (tile * tile_rows).astype(jnp.uint32)

    cdtype = w0_ref.dtype  # bf16 compute inputs, f32 accumulation

    def dense(h, w_ref, b_ref):
        acc = jnp.dot(h.astype(cdtype), w_ref[...],
                      preferred_element_type=jnp.float32)
        return acc + b_ref[...]

    h = jnp.maximum(dense(x_ref[...], w0_ref, b0_ref), 0.0)
    h = _dropout(h, p, seed_u32, 0, row_base)

    h = jnp.maximum(dense(h, w1_ref, b1_ref), 0.0)
    h = _dropout(h, p, seed_u32, 1, row_base)

    h = jnp.maximum(dense(h, w2_ref, b2_ref), 0.0)
    h = _dropout(h, p, seed_u32, 2, row_base)

    o_ref[...] = dense(h, w3_ref, b3_ref).astype(o_ref.dtype)


def mlp_forward(x, params, *, dropout_p=0.1, seed=0, block_rows=512,
                weight_dtype=jnp.bfloat16):
    """x: (N, in_dim) f32.  params: list of 4 (W (in,out) f32, b (out,) f32)."""
    n, in_dim = x.shape
    dims = [in_dim] + [w.shape[1] for (w, _) in params]
    pdims = [_round_up(d, LANE) for d in dims]
    out_dim = dims[-1]

    # Zero-pad weights/biases to lane-aligned shapes (padded rows/cols contribute 0).
    flat_wb = []
    for li, (w, b) in enumerate(params):
        din, dout = dims[li], dims[li + 1]
        pin, pout = pdims[li], pdims[li + 1]
        wp = jnp.zeros((pin, pout), weight_dtype).at[:din, :dout].set(
            w.astype(weight_dtype))
        bp = jnp.zeros((1, pout), jnp.float32).at[:, :dout].set(
            b.reshape(1, -1).astype(jnp.float32))
        flat_wb += [wp, bp]

    # Batch tiling (tile is a multiple of 8 sublanes; big tiles when batch allows).
    tb = min(block_rows, _round_up(n, 8))
    n_pad = _round_up(n, tb)
    xp = jnp.zeros((n_pad, pdims[0]), jnp.float32).at[:n, :in_dim].set(x)
    grid = (n_pad // tb,)

    seed_arr = jnp.array([seed], dtype=jnp.int32)

    # BlockSpecs: x/out tiled over batch; weights/biases constant (stay VMEM-resident).
    x_spec = pl.BlockSpec((tb, pdims[0]), lambda i, s: (i, 0))
    out_spec = pl.BlockSpec((tb, pdims[-1]), lambda i, s: (i, 0))
    wb_specs = []
    for li in range(4):
        pin, pout = pdims[li], pdims[li + 1]
        wb_specs.append(pl.BlockSpec((pin, pout), lambda i, s: (0, 0)))
        wb_specs.append(pl.BlockSpec((1, pout), lambda i, s: (0, 0)))

    # VMEM budget: resident weights/biases (+double-buffer slack) + activation tiles.
    resident = sum(int(a.size) * a.dtype.itemsize for a in flat_wb)
    act = tb * max(pdims) * 4
    vmem_limit = int(min(max(2 * resident + 8 * act, 8 << 20), 48 << 20))

    flops = 2 * n_pad * sum(pdims[i] * pdims[i + 1] for i in range(4))
    bytes_accessed = xp.size * 4 + n_pad * pdims[-1] * 4 + resident
    cost = pl.CostEstimate(flops=flops, transcendentals=0,
                           bytes_accessed=bytes_accessed)

    out = pl.pallas_call(
        functools.partial(mlp_kernel, p=float(dropout_p), tile_rows=tb),
        out_shape=jax.ShapeDtypeStruct((n_pad, pdims[-1]), jnp.float32),
        grid_spec=pltpu.PrefetchScalarGridSpec(
            num_scalar_prefetch=1,
            grid=grid,
            in_specs=[x_spec] + wb_specs,
            out_specs=out_spec,
        ),
        compiler_params=pltpu.CompilerParams(
            dimension_semantics=("parallel",),
            vmem_limit_bytes=vmem_limit,
        ),
        cost_estimate=cost,
    )(seed_arr, xp, *flat_wb)

    return out[:n, :out_dim]


def xavier_uniform(key, fan_in, fan_out):
    bound = math.sqrt(6.0 / (fan_in + fan_out))
    # stored as (in, out) so the kernel computes x @ W (same math as torch Linear)
    return jax.random.uniform(key, (fan_in, fan_out), jnp.float32, -bound, bound)


def init_params(key, in_dim, out_dim):
    dims = [in_dim, in_dim // 2, in_dim // 4, in_dim // 8, out_dim]
    params = []
    for i in range(4):
        key, sub = jax.random.split(key)
        w = xavier_uniform(sub, dims[i], dims[i + 1])
        b = jnp.zeros((dims[i + 1],), jnp.float32)
        params.append((w, b))
    return params


if __name__ == "__main__":
    key = jax.random.PRNGKey(0)
    k_x, k_p = jax.random.split(key)

    batch, in_dim, out_dim = 8, 32, 8  # in_dim // 8 = 4, consistent with the module
    x = jax.random.normal(k_x, (batch, in_dim), jnp.float32)
    params = init_params(k_p, in_dim, out_dim)

    y = mlp_forward(x, params, dropout_p=0.1, seed=1234)
    y = jax.block_until_ready(y)
    assert y.shape == (batch, out_dim)
    assert bool(jnp.all(jnp.isfinite(y)))
    print("KERNEL_OK")
</pallas_src>

<mosaic_0001>
module attributes {stable_mosaic.version = 11 : i64} {
  func.func @mlp_kernel(%arg0: i32, %arg1: memref<1xi32, #tpu.memory_space<smem>>, %arg2: memref<8x128xf32, #tpu.memory_space<vmem>>, %arg3: memref<128x128xbf16, #tpu.memory_space<vmem>>, %arg4: memref<1x128xf32, #tpu.memory_space<vmem>>, %arg5: memref<128x128xbf16, #tpu.memory_space<vmem>>, %arg6: memref<1x128xf32, #tpu.memory_space<vmem>>, %arg7: memref<128x128xbf16, #tpu.memory_space<vmem>>, %arg8: memref<1x128xf32, #tpu.memory_space<vmem>>, %arg9: memref<128x128xbf16, #tpu.memory_space<vmem>>, %arg10: memref<1x128xf32, #tpu.memory_space<vmem>>, %arg11: memref<8x128xf32, #tpu.memory_space<vmem>>) attributes {dimension_semantics = [#tpu.dimension_semantics<parallel>], iteration_bounds = array<i64: 1>, scalar_prefetch = 1 : i64, scratch_operands = 0 : i64, tpu.core_type = #tpu.core_type<tc>, window_params = [{transform_indices = @transform_0, window_bounds = array<i64: 8, 128>}, {pipeline_mode = #tpu.pipeline_mode<synchronous>, transform_indices = @transform_1, window_bounds = array<i64: 128, 128>}, {pipeline_mode = #tpu.pipeline_mode<synchronous>, transform_indices = @transform_2, window_bounds = array<i64: 1, 128>}, {pipeline_mode = #tpu.pipeline_mode<synchronous>, transform_indices = @transform_3, window_bounds = array<i64: 128, 128>}, {pipeline_mode = #tpu.pipeline_mode<synchronous>, transform_indices = @transform_4, window_bounds = array<i64: 1, 128>}, {pipeline_mode = #tpu.pipeline_mode<synchronous>, transform_indices = @transform_5, window_bounds = array<i64: 128, 128>}, {pipeline_mode = #tpu.pipeline_mode<synchronous>, transform_indices = @transform_6, window_bounds = array<i64: 1, 128>}, {pipeline_mode = #tpu.pipeline_mode<synchronous>, transform_indices = @transform_7, window_bounds = array<i64: 128, 128>}, {pipeline_mode = #tpu.pipeline_mode<synchronous>, transform_indices = @transform_8, window_bounds = array<i64: 1, 128>}, {transform_indices = @transform_9, window_bounds = array<i64: 8, 128>}]} {
    %c0 = arith.constant 0 : index
    %0 = memref.load %arg1[%c0] : memref<1xi32, #tpu.memory_space<smem>>
    %c8_i32 = arith.constant 8 : i32
    %1 = arith.muli %arg0, %c8_i32 : i32
    %c0_0 = arith.constant 0 : index
    %c0_1 = arith.constant 0 : index
    %2 = vector.load %arg2[%c0_0, %c0_1] : memref<8x128xf32, #tpu.memory_space<vmem>>, vector<8x128xf32>
    %3 = arith.truncf %2 : vector<8x128xf32> to vector<8x128xbf16>
    %c0_2 = arith.constant 0 : index
    %c0_3 = arith.constant 0 : index
    %4 = vector.load %arg3[%c0_2, %c0_3] : memref<128x128xbf16, #tpu.memory_space<vmem>>, vector<128x128xbf16>
    %cst = arith.constant dense<0.000000e+00> : vector<8x128xf32>
    %5 = tpu.matmul %3, %4, %cst {dimension_numbers = #tpu.dot_dimension_numbers<[1], [0], [0], [1], [0, 0, 1, 1], [], []>} : vector<8x128xbf16>, vector<128x128xbf16>, vector<8x128xf32> -> vector<8x128xf32>
    %c0_4 = arith.constant 0 : index
    %c0_5 = arith.constant 0 : index
    %6 = vector.load %arg4[%c0_4, %c0_5] : memref<1x128xf32, #tpu.memory_space<vmem>>, vector<1x128xf32>
    %7 = vector.broadcast %6 : vector<1x128xf32> to vector<8x128xf32>
    %8 = arith.addf %5, %7 : vector<8x128xf32>
    %cst_6 = arith.constant 0.000000e+00 : f32
    %9 = vector.broadcast %cst_6 : f32 to vector<8x128xf32>
    %10 = arith.maximumf %8, %9 : vector<8x128xf32>
    %11 = tpu.iota {dimensions = array<i32: 0>} : vector<8x128xi32>
    %12 = tpu.iota {dimensions = array<i32: 1>} : vector<8x128xi32>
    %13 = vector.broadcast %1 : i32 to vector<8x128xi32>
    %14 = arith.addi %11, %13 : vector<8x128xi32>
    %c-1640531527_i32 = arith.constant -1640531527 : i32
    %15 = arith.muli %0, %c-1640531527_i32 : i32
    %c-2048144777_i32 = arith.constant -2048144777 : i32
    %16 = arith.addi %15, %c-2048144777_i32 : i32
    %c16777619_i32 = arith.constant 16777619 : i32
    %17 = vector.broadcast %c16777619_i32 : i32 to vector<8x128xi32>
    %18 = arith.muli %14, %17 : vector<8x128xi32>
    %19 = arith.addi %18, %12 : vector<8x128xi32>
    %20 = vector.broadcast %16 : i32 to vector<8x128xi32>
    %21 = arith.xori %19, %20 : vector<8x128xi32>
    %c16_i32 = arith.constant 16 : i32
    %22 = vector.broadcast %c16_i32 : i32 to vector<8x128xi32>
    %23 = arith.shrui %21, %22 : vector<8x128xi32>
    %24 = arith.xori %21, %23 : vector<8x128xi32>
    %c2146121005_i32 = arith.constant 2146121005 : i32
    %25 = vector.broadcast %c2146121005_i32 : i32 to vector<8x128xi32>
    %26 = arith.muli %24, %25 : vector<8x128xi32>
    %c15_i32 = arith.constant 15 : i32
    %27 = vector.broadcast %c15_i32 : i32 to vector<8x128xi32>
    %28 = arith.shrui %26, %27 : vector<8x128xi32>
    %29 = arith.xori %26, %28 : vector<8x128xi32>
    %c-2073254261_i32 = arith.constant -2073254261 : i32
    %30 = vector.broadcast %c-2073254261_i32 : i32 to vector<8x128xi32>
    %31 = arith.muli %29, %30 : vector<8x128xi32>
    %c16_i32_7 = arith.constant 16 : i32
    %32 = vector.broadcast %c16_i32_7 : i32 to vector<8x128xi32>
    %33 = arith.shrui %31, %32 : vector<8x128xi32>
    %34 = arith.xori %31, %33 : vector<8x128xi32>
    %c8_i32_8 = arith.constant 8 : i32
    %35 = vector.broadcast %c8_i32_8 : i32 to vector<8x128xi32>
    %36 = arith.shrui %34, %35 : vector<8x128xi32>
    %c15099494_i32 = arith.constant 15099494 : i32
    %37 = vector.broadcast %c15099494_i32 : i32 to vector<8x128xi32>
    %38 = arith.cmpi slt, %36, %37 : vector<8x128xi32>
    %cst_9 = arith.constant 1.11111116 : f32
    %39 = vector.broadcast %cst_9 : f32 to vector<8x128xf32>
    %40 = arith.mulf %10, %39 : vector<8x128xf32>
    %cst_10 = arith.constant 0.000000e+00 : f32
    %41 = vector.broadcast %cst_10 : f32 to vector<8x128xf32>
    %42 = arith.select %38, %40, %41 : vector<8x128xi1>, vector<8x128xf32>
    %43 = arith.truncf %42 : vector<8x128xf32> to vector<8x128xbf16>
    %c0_11 = arith.constant 0 : index
    %c0_12 = arith.constant 0 : index
    %44 = vector.load %arg5[%c0_11, %c0_12] : memref<128x128xbf16, #tpu.memory_space<vmem>>, vector<128x128xbf16>
    %cst_13 = arith.constant dense<0.000000e+00> : vector<8x128xf32>
    %45 = tpu.matmul %43, %44, %cst_13 {dimension_numbers = #tpu.dot_dimension_numbers<[1], [0], [0], [1], [0, 0, 1, 1], [], []>} : vector<8x128xbf16>, vector<128x128xbf16>, vector<8x128xf32> -> vector<8x128xf32>
    %c0_14 = arith.constant 0 : index
    %c0_15 = arith.constant 0 : index
    %46 = vector.load %arg6[%c0_14, %c0_15] : memref<1x128xf32, #tpu.memory_space<vmem>>, vector<1x128xf32>
    %47 = vector.broadcast %46 : vector<1x128xf32> to vector<8x128xf32>
    %48 = arith.addf %45, %47 : vector<8x128xf32>
    %cst_16 = arith.constant 0.000000e+00 : f32
    %49 = vector.broadcast %cst_16 : f32 to vector<8x128xf32>
    %50 = arith.maximumf %48, %49 : vector<8x128xf32>
    %51 = tpu.iota {dimensions = array<i32: 0>} : vector<8x128xi32>
    %52 = tpu.iota {dimensions = array<i32: 1>} : vector<8x128xi32>
    %53 = vector.broadcast %1 : i32 to vector<8x128xi32>
    %54 = arith.addi %51, %53 : vector<8x128xi32>
    %c-1640531527_i32_17 = arith.constant -1640531527 : i32
    %55 = arith.muli %0, %c-1640531527_i32_17 : i32
    %c198677742_i32 = arith.constant 198677742 : i32
    %56 = arith.addi %55, %c198677742_i32 : i32
    %c16777619_i32_18 = arith.constant 16777619 : i32
    %57 = vector.broadcast %c16777619_i32_18 : i32 to vector<8x128xi32>
    %58 = arith.muli %54, %57 : vector<8x128xi32>
    %59 = arith.addi %58, %52 : vector<8x128xi32>
    %60 = vector.broadcast %56 : i32 to vector<8x128xi32>
    %61 = arith.xori %59, %60 : vector<8x128xi32>
    %c16_i32_19 = arith.constant 16 : i32
    %62 = vector.broadcast %c16_i32_19 : i32 to vector<8x128xi32>
    %63 = arith.shrui %61, %62 : vector<8x128xi32>
    %64 = arith.xori %61, %63 : vector<8x128xi32>
    %c2146121005_i32_20 = arith.constant 2146121005 : i32
    %65 = vector.broadcast %c2146121005_i32_20 : i32 to vector<8x128xi32>
    %66 = arith.muli %64, %65 : vector<8x128xi32>
    %c15_i32_21 = arith.constant 15 : i32
    %67 = vector.broadcast %c15_i32_21 : i32 to vector<8x128xi32>
    %68 = arith.shrui %66, %67 : vector<8x128xi32>
    %69 = arith.xori %66, %68 : vector<8x128xi32>
    %c-2073254261_i32_22 = arith.constant -2073254261 : i32
    %70 = vector.broadcast %c-2073254261_i32_22 : i32 to vector<8x128xi32>
    %71 = arith.muli %69, %70 : vector<8x128xi32>
    %c16_i32_23 = arith.constant 16 : i32
    %72 = vector.broadcast %c16_i32_23 : i32 to vector<8x128xi32>
    %73 = arith.shrui %71, %72 : vector<8x128xi32>
    %74 = arith.xori %71, %73 : vector<8x128xi32>
    %c8_i32_24 = arith.constant 8 : i32
    %75 = vector.broadcast %c8_i32_24 : i32 to vector<8x128xi32>
    %76 = arith.shrui %74, %75 : vector<8x128xi32>
    %c15099494_i32_25 = arith.constant 15099494 : i32
    %77 = vector.broadcast %c15099494_i32_25 : i32 to vector<8x128xi32>
    %78 = arith.cmpi slt, %76, %77 : vector<8x128xi32>
    %cst_26 = arith.constant 1.11111116 : f32
    %79 = vector.broadcast %cst_26 : f32 to vector<8x128xf32>
    %80 = arith.mulf %50, %79 : vector<8x128xf32>
    %cst_27 = arith.constant 0.000000e+00 : f32
    %81 = vector.broadcast %cst_27 : f32 to vector<8x128xf32>
    %82 = arith.select %78, %80, %81 : vector<8x128xi1>, vector<8x128xf32>
    %83 = arith.truncf %82 : vector<8x128xf32> to vector<8x128xbf16>
    %c0_28 = arith.constant 0 : index
    %c0_29 = arith.constant 0 : index
    %84 = vector.load %arg7[%c0_28, %c0_29] : memref<128x128xbf16, #tpu.memory_space<vmem>>, vector<128x128xbf16>
    %cst_30 = arith.constant dense<0.000000e+00> : vector<8x128xf32>
    %85 = tpu.matmul %83, %84, %cst_30 {dimension_numbers = #tpu.dot_dimension_numbers<[1], [0], [0], [1], [0, 0, 1, 1], [], []>} : vector<8x128xbf16>, vector<128x128xbf16>, vector<8x128xf32> -> vector<8x128xf32>
    %c0_31 = arith.constant 0 : index
    %c0_32 = arith.constant 0 : index
    %86 = vector.load %arg8[%c0_31, %c0_32] : memref<1x128xf32, #tpu.memory_space<vmem>>, vector<1x128xf32>
    %87 = vector.broadcast %86 : vector<1x128xf32> to vector<8x128xf32>
    %88 = arith.addf %85, %87 : vector<8x128xf32>
    %cst_33 = arith.constant 0.000000e+00 : f32
    %89 = vector.broadcast %cst_33 : f32 to vector<8x128xf32>
    %90 = arith.maximumf %88, %89 : vector<8x128xf32>
    %91 = tpu.iota {dimensions = array<i32: 0>} : vector<8x128xi32>
    %92 = tpu.iota {dimensions = array<i32: 1>} : vector<8x128xi32>
    %93 = vector.broadcast %1 : i32 to vector<8x128xi32>
    %94 = arith.addi %91, %93 : vector<8x128xi32>
    %c-1640531527_i32_34 = arith.constant -1640531527 : i32
    %95 = arith.muli %0, %c-1640531527_i32_34 : i32
    %c-1849467035_i32 = arith.constant -1849467035 : i32
    %96 = arith.addi %95, %c-1849467035_i32 : i32
    %c16777619_i32_35 = arith.constant 16777619 : i32
    %97 = vector.broadcast %c16777619_i32_35 : i32 to vector<8x128xi32>
    %98 = arith.muli %94, %97 : vector<8x128xi32>
    %99 = arith.addi %98, %92 : vector<8x128xi32>
    %100 = vector.broadcast %96 : i32 to vector<8x128xi32>
    %101 = arith.xori %99, %100 : vector<8x128xi32>
    %c16_i32_36 = arith.constant 16 : i32
    %102 = vector.broadcast %c16_i32_36 : i32 to vector<8x128xi32>
    %103 = arith.shrui %101, %102 : vector<8x128xi32>
    %104 = arith.xori %101, %103 : vector<8x128xi32>
    %c2146121005_i32_37 = arith.constant 2146121005 : i32
    %105 = vector.broadcast %c2146121005_i32_37 : i32 to vector<8x128xi32>
    %106 = arith.muli %104, %105 : vector<8x128xi32>
    %c15_i32_38 = arith.constant 15 : i32
    %107 = vector.broadcast %c15_i32_38 : i32 to vector<8x128xi32>
    %108 = arith.shrui %106, %107 : vector<8x128xi32>
    %109 = arith.xori %106, %108 : vector<8x128xi32>
    %c-2073254261_i32_39 = arith.constant -2073254261 : i32
    %110 = vector.broadcast %c-2073254261_i32_39 : i32 to vector<8x128xi32>
    %111 = arith.muli %109, %110 : vector<8x128xi32>
    %c16_i32_40 = arith.constant 16 : i32
    %112 = vector.broadcast %c16_i32_40 : i32 to vector<8x128xi32>
    %113 = arith.shrui %111, %112 : vector<8x128xi32>
    %114 = arith.xori %111, %113 : vector<8x128xi32>
    %c8_i32_41 = arith.constant 8 : i32
    %115 = vector.broadcast %c8_i32_41 : i32 to vector<8x128xi32>
    %116 = arith.shrui %114, %115 : vector<8x128xi32>
    %c15099494_i32_42 = arith.constant 15099494 : i32
    %117 = vector.broadcast %c15099494_i32_42 : i32 to vector<8x128xi32>
    %118 = arith.cmpi slt, %116, %117 : vector<8x128xi32>
    %cst_43 = arith.constant 1.11111116 : f32
    %119 = vector.broadcast %cst_43 : f32 to vector<8x128xf32>
    %120 = arith.mulf %90, %119 : vector<8x128xf32>
    %cst_44 = arith.constant 0.000000e+00 : f32
    %121 = vector.broadcast %cst_44 : f32 to vector<8x128xf32>
    %122 = arith.select %118, %120, %121 : vector<8x128xi1>, vector<8x128xf32>
    %123 = arith.truncf %122 : vector<8x128xf32> to vector<8x128xbf16>
    %c0_45 = arith.constant 0 : index
    %c0_46 = arith.constant 0 : index
    %124 = vector.load %arg9[%c0_45, %c0_46] : memref<128x128xbf16, #tpu.memory_space<vmem>>, vector<128x128xbf16>
    %cst_47 = arith.constant dense<0.000000e+00> : vector<8x128xf32>
    %125 = tpu.matmul %123, %124, %cst_47 {dimension_numbers = #tpu.dot_dimension_numbers<[1], [0], [0], [1], [0, 0, 1, 1], [], []>} : vector<8x128xbf16>, vector<128x128xbf16>, vector<8x128xf32> -> vector<8x128xf32>
    %c0_48 = arith.constant 0 : index
    %c0_49 = arith.constant 0 : index
    %126 = vector.load %arg10[%c0_48, %c0_49] : memref<1x128xf32, #tpu.memory_space<vmem>>, vector<1x128xf32>
    %127 = vector.broadcast %126 : vector<1x128xf32> to vector<8x128xf32>
    %128 = arith.addf %125, %127 : vector<8x128xf32>
    %c0_50 = arith.constant 0 : index
    %c0_51 = arith.constant 0 : index
    %129 = vector.load %arg11[%c0_50, %c0_51] : memref<8x128xf32, #tpu.memory_space<vmem>>, vector<8x128xf32>
    tpu.vector_store %arg11[%c0_50, %c0_51], %128 {strides = array<i32>} : memref<8x128xf32, #tpu.memory_space<vmem>>, vector<8x128xf32>,
    return
  }
  func.func @transform_0(%arg0: i32, %arg1: memref<1xi32, #tpu.memory_space<smem>>) -> (i32, i32) {
    %c0_i32 = arith.constant 0 : i32
    %c0_i32_0 = arith.constant 0 : i32
    return %arg0, %c0_i32 : i32, i32
  }
  func.func @transform_1(%arg0: i32, %arg1: memref<1xi32, #tpu.memory_space<smem>>) -> (i32, i32) {
    %c0_i32 = arith.constant 0 : i32
    %c0_i32_0 = arith.constant 0 : i32
    %c0_i32_1 = arith.constant 0 : i32
    return %c0_i32, %c0_i32_0 : i32, i32
  }
  func.func @transform_2(%arg0: i32, %arg1: memref<1xi32, #tpu.memory_space<smem>>) -> (i32, i32) {
    %c0_i32 = arith.constant 0 : i32
    %c0_i32_0 = arith.constant 0 : i32
    %c0_i32_1 = arith.constant 0 : i32
    return %c0_i32, %c0_i32_0 : i32, i32
  }
  func.func @transform_3(%arg0: i32, %arg1: memref<1xi32, #tpu.memory_space<smem>>) -> (i32, i32) {
    %c0_i32 = arith.constant 0 : i32
    %c0_i32_0 = arith.constant 0 : i32
    %c0_i32_1 = arith.constant 0 : i32
    return %c0_i32, %c0_i32_0 : i32, i32
  }
  func.func @transform_4(%arg0: i32, %arg1: memref<1xi32, #tpu.memory_space<smem>>) -> (i32, i32) {
    %c0_i32 = arith.constant 0 : i32
    %c0_i32_0 = arith.constant 0 : i32
    %c0_i32_1 = arith.constant 0 : i32
    return %c0_i32, %c0_i32_0 : i32, i32
  }
  func.func @transform_5(%arg0: i32, %arg1: memref<1xi32, #tpu.memory_space<smem>>) -> (i32, i32) {
    %c0_i32 = arith.constant 0 : i32
    %c0_i32_0 = arith.constant 0 : i32
    %c0_i32_1 = arith.constant 0 : i32
    return %c0_i32, %c0_i32_0 : i32, i32
  }
  func.func @transform_6(%arg0: i32, %arg1: memref<1xi32, #tpu.memory_space<smem>>) -> (i32, i32) {
    %c0_i32 = arith.constant 0 : i32
    %c0_i32_0 = arith.constant 0 : i32
    %c0_i32_1 = arith.constant 0 : i32
    return %c0_i32, %c0_i32_0 : i32, i32
  }
  func.func @transform_7(%arg0: i32, %arg1: memref<1xi32, #tpu.memory_space<smem>>) -> (i32, i32) {
    %c0_i32 = arith.constant 0 : i32
    %c0_i32_0 = arith.constant 0 : i32
    %c0_i32_1 = arith.constant 0 : i32
    return %c0_i32, %c0_i32_0 : i32, i32
  }
  func.func @transform_8(%arg0: i32, %arg1: memref<1xi32, #tpu.memory_space<smem>>) -> (i32, i32) {
    %c0_i32 = arith.constant 0 : i32
    %c0_i32_0 = arith.constant 0 : i32
    %c0_i32_1 = arith.constant 0 : i32
    return %c0_i32, %c0_i32_0 : i32, i32
  }
  func.func @transform_9(%arg0: i32, %arg1: memref<1xi32, #tpu.memory_space<smem>>) -> (i32, i32) {
    %c0_i32 = arith.constant 0 : i32
    %c0_i32_0 = arith.constant 0 : i32
    return %arg0, %c0_i32 : i32, i32
  }
}

</mosaic_0001>

<llo_original>
// kernel: tpu_custom_call.1
$region0: #{tpu_custom_call.1}
  #allocation0 [shape = 'u32[]', space=smem, size = 0x4, offset = 0x4, fixed_abs, tag = 'smem constant byte address 0x4 - core index']
  #allocation1 [shape = 'u32[144,128]{1,0:T(1,128)}', space=vmem, size = 0x12000, scoped, tag = 'internal scratch']
  #allocation2 [shape = 's32[1]{0}', space=sflag, size = 0x4, scoped, tag = 'scoped memory for tpu_custom_call.1']
  #allocation3 [shape = 's32[1]{0:T(128)S(6)}', space=smem, size = 0x200, scoped, tag = 'prefetched SMEM operand 0']
  %s0 = inlined_call_operand.<no memory space> [shape: s32[1], index: 0, kind: input, shape index: {}]
  %s1 = inlined_call_operand.hbm [shape: f32[8,128], index: 1, kind: input, shape index: {}]
  %s2 = inlined_call_operand.hbm [shape: bf16[128,128], index: 2, kind: input, shape index: {}]
  %s3 = inlined_call_operand.vmem [shape: f32[1,128], index: 3, kind: input, shape index: {}]
  %s4 = inlined_call_operand.hbm [shape: bf16[128,128], index: 4, kind: input, shape index: {}]
  %s5 = inlined_call_operand.vmem [shape: f32[1,128], index: 5, kind: input, shape index: {}]
  %s6 = inlined_call_operand.hbm [shape: bf16[128,128], index: 6, kind: input, shape index: {}]
  %s7 = inlined_call_operand.vmem [shape: f32[1,128], index: 7, kind: input, shape index: {}]
  %s8 = inlined_call_operand.hbm [shape: bf16[128,128], index: 8, kind: input, shape index: {}]
  %s9 = inlined_call_operand.vmem [shape: f32[1,128], index: 9, kind: input, shape index: {}]
  %s10 = inlined_call_operand.hbm [shape: f32[8,128], index: 10, kind: output, shape index: {}]
  %s11 = sld [smem:[#allocation0]]
  $region66: #{tpu_custom_call.1} parent=0
    _
  %s13 = ssub.s32 1, %s11
  %s14 = scalar_select 0, %s13, %s11
  %15 = sst [smem:[#allocation3]] %s0
  $region1: #{tpu_custom_call.1} parent=0
    #allocation4 [shape = 'u8[4096]{0}', space=vmem, size = 0x1000, scoped, tag = 'input window, operand 1, single buffered']
    #allocation5 [shape = 's32[1]{0}', space=sflag, size = 0x4, scoped, tag = 'scoped memory for tpu_custom_call.1']
    #allocation6 [shape = 's32[1]{0}', space=sflag, size = 0x4, scoped, tag = 'scoped memory for tpu_custom_call.1']
    #allocation7 [shape = 'u8[32768]{0}', space=vmem, size = 0x8000, scoped, tag = 'input window, operand 2, single buffered']
    #allocation8 [shape = 's32[1]{0}', space=sflag, size = 0x4, scoped, tag = 'scoped memory for tpu_custom_call.1']
    #allocation9 [shape = 'u8[32768]{0}', space=vmem, size = 0x8000, scoped, tag = 'input window, operand 4, single buffered']
    #allocation10 [shape = 'u8[32768]{0}', space=vmem, size = 0x8000, scoped, tag = 'input window, operand 6, single buffered']
    #allocation11 [shape = 's32[1]{0}', space=sflag, size = 0x4, scoped, tag = 'scoped memory for tpu_custom_call.1']
    #allocation12 [shape = 'u8[32768]{0}', space=vmem, size = 0x8000, scoped, tag = 'input window, operand 8, single buffered']
    #allocation13 [shape = 'u8[4096]{0}', space=vmem, size = 0x1000, scoped, tag = 'output window, operand 0, single buffered']
    %16 = vsyncpa [#allocation5], 0
    %17 = vsyncpa [#allocation8], 0
    %18 = vsyncpa [#allocation11], 0
    %19 = vsyncpa [#allocation6], 0
    // Predicated region
    $region2: #{tpu_custom_call.1} parent=1 // pred_check
      _
    $region3: #{tpu_custom_call.1} parent=1 // pred_check_branch
      %21 = sbr.rel (0) target = $region5
    $region4: #{tpu_custom_call.1} parent=1 // pred_region
      %s23 = ssub.s32 128, 128
      %24 = vsyncadd [#allocation5], %s23
      %s26 = sshll.u32 [#allocation4], 4
      %s27 = int_to_ptr.vmem [resolvable:$true] %s26
      %29 = dma.hbm_to_vmem [thread:$0]  %s1, 128, %s27, [#allocation5]
    $region5: #{tpu_custom_call.1} parent=1 // pred_fallthru
      _
    // Predicated region
    $region6: #{tpu_custom_call.1} parent=1 // pred_check
      _
    $region7: #{tpu_custom_call.1} parent=1 // pred_check_branch
      %31 = sbr.rel (0) target = $region9
    $region8: #{tpu_custom_call.1} parent=1 // pred_region
      %s33 = ssub.s32 1024, 1024
      %34 = vsyncadd [#allocation8], %s33
      %s35 = sshll.u32 [#allocation7], 4
      %s36 = int_to_ptr.vmem [resolvable:$true] %s35
      %41 = dma.hbm_to_vmem [thread:$0]  %s2, 1024, %s36, [#allocation8], 64, 64, 4
    $region9: #{tpu_custom_call.1} parent=1 // pred_fallthru
      _
    // Predicated region
    $region10: #{tpu_custom_call.1} parent=1 // pred_check
      _
    $region11: #{tpu_custom_call.1} parent=1 // pred_check_branch
      %43 = sbr.rel (0) target = $region13
    $region12: #{tpu_custom_call.1} parent=1 // pred_region
      _
    $region13: #{tpu_custom_call.1} parent=1 // pred_fallthru
      _
    // Predicated region
    $region14: #{tpu_custom_call.1} parent=1 // pred_check
      _
    $region15: #{tpu_custom_call.1} parent=1 // pred_check_branch
      %45 = sbr.rel (0) target = $region17
    $region16: #{tpu_custom_call.1} parent=1 // pred_region
      %s47 = ssub.s32 1024, 1024
      %48 = vsyncadd [#allocation8], %s47
      %s49 = sshll.u32 [#allocation9], 4
      %s50 = int_to_ptr.vmem [resolvable:$true] %s49
      %55 = dma.hbm_to_vmem [thread:$0]  %s4, 1024, %s50, [#allocation8], 64, 64, 4
    $region17: #{tpu_custom_call.1} parent=1 // pred_fallthru
      _
    // Predicated region
    $region18: #{tpu_custom_call.1} parent=1 // pred_check
      _
    $region19: #{tpu_custom_call.1} parent=1 // pred_check_branch
      %57 = sbr.rel (0) target = $region21
    $region20: #{tpu_custom_call.1} parent=1 // pred_region
      _
    $region21: #{tpu_custom_call.1} parent=1 // pred_fallthru
      _
    // Predicated region
    $region22: #{tpu_custom_call.1} parent=1 // pred_check
      _
    $region23: #{tpu_custom_call.1} parent=1 // pred_check_branch
      %59 = sbr.rel (0) target = $region25
    $region24: #{tpu_custom_call.1} parent=1 // pred_region
      %s61 = ssub.s32 1024, 1024
      %62 = vsyncadd [#allocation11], %s61
      %s63 = sshll.u32 [#allocation10], 4
      %s64 = int_to_ptr.vmem [resolvable:$true] %s63
      %69 = dma.hbm_to_vmem [thread:$0]  %s6, 1024, %s64, [#allocation11], 64, 64, 4
    $region25: #{tpu_custom_call.1} parent=1 // pred_fallthru
      _
    // Predicated region
    $region26: #{tpu_custom_call.1} parent=1 // pred_check
      _
    $region27: #{tpu_custom_call.1} parent=1 // pred_check_branch
      %71 = sbr.rel (0) target = $region29
    $region28: #{tpu_custom_call.1} parent=1 // pred_region
      _
    $region29: #{tpu_custom_call.1} parent=1 // pred_fallthru
      _
    // Predicated region
    $region30: #{tpu_custom_call.1} parent=1 // pred_check
      _
    $region31: #{tpu_custom_call.1} parent=1 // pred_check_branch
      %73 = sbr.rel (0) target = $region33
    $region32: #{tpu_custom_call.1} parent=1 // pred_region
      %s75 = ssub.s32 1024, 1024
      %76 = vsyncadd [#allocation11], %s75
      %s77 = sshll.u32 [#allocation12], 4
      %s78 = int_to_ptr.vmem [resolvable:$true] %s77
      %83 = dma.hbm_to_vmem [thread:$0]  %s8, 1024, %s78, [#allocation11], 64, 64, 4
    $region33: #{tpu_custom_call.1} parent=1 // pred_fallthru
      _
    // Predicated region
    $region34: #{tpu_custom_call.1} parent=1 // pred_check
      _
    $region35: #{tpu_custom_call.1} parent=1 // pred_check_branch
      %85 = sbr.rel (0) target = $region37
    $region36: #{tpu_custom_call.1} parent=1 // pred_region
      _
    $region37: #{tpu_custom_call.1} parent=1 // pred_fallthru
      _
    // Predicated region
    $region38: #{tpu_custom_call.1} parent=1 // pred_check
      _
    $region39: #{tpu_custom_call.1} parent=1 // pred_check_branch
      %87 = sbr.rel (0) target = $region41
    $region40: #{tpu_custom_call.1} parent=1 // pred_region
      %88 = dma.done [#allocation5], 128
    $region41: #{tpu_custom_call.1} parent=1 // pred_fallthru
      _
    // Predicated region
    $region42: #{tpu_custom_call.1} parent=1 // pred_check
      _
    $region43: #{tpu_custom_call.1} parent=1 // pred_check_branch
      %90 = sbr.rel (0) target = $region45
    $region44: #{tpu_custom_call.1} parent=1 // pred_region
      %91 = dma.done [#allocation8], 1024
    $region45: #{tpu_custom_call.1} parent=1 // pred_fallthru
      _
    // Predicated region
    $region46: #{tpu_custom_call.1} parent=1 // pred_check
      _
    $region47: #{tpu_custom_call.1} parent=1 // pred_check_branch
      %93 = sbr.rel (0) target = $region49
    $region48: #{tpu_custom_call.1} parent=1 // pred_region
      %94 = dma.done [#allocation8], 1024
    $region49: #{tpu_custom_call.1} parent=1 // pred_fallthru
      _
    // Predicated region
    $region50: #{tpu_custom_call.1} parent=1 // pred_check
      _
    $region51: #{tpu_custom_call.1} parent=1 // pred_check_branch
      %96 = sbr.rel (0) target = $region53
    $region52: #{tpu_custom_call.1} parent=1 // pred_region
      %97 = dma.done [#allocation11], 1024
    $region53: #{tpu_custom_call.1} parent=1 // pred_fallthru
      _
    // Predicated region
    $region54: #{tpu_custom_call.1} parent=1 // pred_check
      _
    $region55: #{tpu_custom_call.1} parent=1 // pred_check_branch
      %99 = sbr.rel (0) target = $region57
    $region56: #{tpu_custom_call.1} parent=1 // pred_region
      %100 = dma.done [#allocation11], 1024
    $region57: #{tpu_custom_call.1} parent=1 // pred_fallthru
      _
    %s102 = sld [smem:[#allocation3]]
    %s103 = smul.u32 0, 8
    %v104 = vld [vmem:[#allocation4] sm:$0xff]
    %v105 = vpack.c.bf16 %v104, %v104
    %v106 = vld [vmem:[#allocation7] sm:$0xf]
    %v107 = vld [vmem:[#allocation7 + $0x4] sm:$0xf]
    %v108 = vld [vmem:[#allocation7 + $0x8] sm:$0xf]
    %v109 = vld [vmem:[#allocation7 + $0xc] sm:$0xf]
    %v110 = vld [vmem:[#allocation7 + $0x10] sm:$0xf]
    %v111 = vld [vmem:[#allocation7 + $0x14] sm:$0xf]
    %v112 = vld [vmem:[#allocation7 + $0x18] sm:$0xf]
    %v113 = vld [vmem:[#allocation7 + $0x1c] sm:$0xf]
    %v114 = vld [vmem:[#allocation7 + $0x20] sm:$0xf]
    %v115 = vld [vmem:[#allocation7 + $0x24] sm:$0xf]
    %v116 = vld [vmem:[#allocation7 + $0x28] sm:$0xf]
    %v117 = vld [vmem:[#allocation7 + $0x2c] sm:$0xf]
    %v118 = vld [vmem:[#allocation7 + $0x30] sm:$0xf]
    %v119 = vld [vmem:[#allocation7 + $0x34] sm:$0xf]
    %v120 = vld [vmem:[#allocation7 + $0x38] sm:$0xf]
    %v121 = vld [vmem:[#allocation7 + $0x3c] sm:$0xf]
    %v122 = vld [vmem:[%s3] sm:$0x1]
    %v124 = vlaneseq
    %v125 = vshrl.u32 %v124, 7
    %v126 = vsub.s32 0, %v125
    %v127 = vrot.slane %v122, %v126
    %v145 = vunpack.c.l.b16 %v106
    %v146 = vunpack.c.l.b16 %v107
    %v147 = vunpack.c.l.b16 %v108
    %v148 = vunpack.c.l.b16 %v109
    %v149 = vunpack.c.l.b16 %v110
    %v150 = vunpack.c.l.b16 %v111
    %v151 = vunpack.c.l.b16 %v112
    %v152 = vunpack.c.l.b16 %v113
    %v153 = vunpack.c.l.b16 %v114
    %v154 = vunpack.c.l.b16 %v115
    %v155 = vunpack.c.l.b16 %v116
    %v156 = vunpack.c.l.b16 %v117
    %v157 = vunpack.c.l.b16 %v118
    %v158 = vunpack.c.l.b16 %v119
    %v159 = vunpack.c.l.b16 %v120
    %v160 = vunpack.c.l.b16 %v121
    %v161 = vpack.c.b16 %v146, %v145
    %v162 = vpack.c.b16 %v148, %v147
    %v163 = vpack.c.b16 %v150, %v149
    %v164 = vpack.c.b16 %v152, %v151
    %v165 = vpack.c.b16 %v154, %v153
    %v166 = vpack.c.b16 %v156, %v155
    %v167 = vpack.c.b16 %v158, %v157
    %v168 = vpack.c.b16 %v160, %v159
    %177 = vmatprep.subr.bf16.mxu0 0
    %178 = vmatpush1.bf16.msra.mxu0 %v161
    %179 = vmatprep.subr.bf16.mxu0 0
    %180 = vmatpush1.bf16.msra.mxu0 %v162
    %181 = vmatprep.subr.bf16.mxu0 0
    %182 = vmatpush1.bf16.msra.mxu0 %v163
    %183 = vmatprep.subr.bf16.mxu0 0
    %184 = vmatpush1.bf16.msra.mxu0 %v164
    %185 = vmatprep.subr.bf16.mxu0 0
    %186 = vmatpush1.bf16.msra.mxu0 %v165
    %187 = vmatprep.subr.bf16.mxu0 0
    %188 = vmatpush1.bf16.msra.mxu0 %v166
    %189 = vmatprep.subr.bf16.mxu0 0
    %190 = vmatpush1.bf16.msra.mxu0 %v167
    %191 = vmatprep.subr.bf16.mxu0 0
    %192 = vmatpush1.bf16.msra.mxu0 %v168
    %193 = vmatprep.subr.bf16.mxu0 0
    %194 = vmatpush1.bf16.msra.mxu0 0
    %195 = vmatprep.subr.bf16.mxu0 0
    %196 = vmatpush1.bf16.msra.mxu0 0
    %197 = vmatprep.subr.bf16.mxu0 0
    %198 = vmatpush1.bf16.msra.mxu0 0
    %199 = vmatprep.subr.bf16.mxu0 0
    %200 = vmatpush1.bf16.msra.mxu0 0
    %201 = vmatprep.subr.bf16.mxu0 0
    %202 = vmatpush1.bf16.msra.mxu0 0
    %203 = vmatprep.subr.bf16.mxu0 0
    %204 = vmatpush1.bf16.msra.mxu0 0
    %205 = vmatprep.subr.bf16.mxu0 0
    %206 = vmatpush1.bf16.msra.mxu0 0
    %207 = vmatprep.subr.bf16.mxu0 0
    %208 = vmatpush1.bf16.msra.mxu0 0
    %209 = vmatprep.mubr.bf16.mxu0 0
    %210 = vmatmul.mubr.bf16.gmra.mrb[0].mxu0 %v105
    %v211 = vpop.f32.mrb[0].mxu0
    %v212 = vadd.f32 %v127, %v211
    %v213 = vpop.f32.mrb[0].mxu0
    %v214 = vpop.f32.mrb[0].mxu0
    %v215 = vpop.f32.mrb[0].mxu0
    %216 = vdwg.mxu0
    %v217 = vmax.f32 %v212, 0.0
    %v218 = vlaneseq
    %v219 = vshrl.u32 %v218, 7
    %v220 = vlaneseq
    %v221 = vand.u32 %v220, 127
    %v222 = vstv %s103
    %v223 = vadd.s32 %v219, %v222
    %s224 = smul.u32 %s102, 2654435769
    %s225 = sadd.s32 %s224, 2246822519
    %v226 = vmul.u32 %v223, 16777619
    %v227 = vadd.s32 %v226, %v221
    %v228 = vstv %s225
    %v229 = vxor.u32 %v227, %v228
    %v230 = vshrl.u32 %v229, 16
    %v231 = vxor.u32 %v229, %v230
    %v232 = vmul.u32 %v231, 2146121005
    %v233 = vshrl.u32 %v232, 15
    %v234 = vxor.u32 %v232, %v233
    %v235 = vmul.u32 %v234, 2221713035
    %v236 = vshrl.u32 %v235, 16
    %v237 = vxor.u32 %v235, %v236
    %v238 = vshrl.u32 %v237, 8
    %vm239 = vcmp.lt.s32.totalorder %v238, 15099494
    %v240 = vmul.f32 %v217, 1.1111112
    %v241 = vsel %vm239, %v240, 0.0
    %v242 = vpack.c.bf16 %v241, %v241
    %v243 = vld [vmem:[#allocation9] sm:$0xf]
    %v244 = vld [vmem:[#allocation9 + $0x4] sm:$0xf]
    %v245 = vld [vmem:[#allocation9 + $0x8] sm:$0xf]
    %v246 = vld [vmem:[#allocation9 + $0xc] sm:$0xf]
    %v247 = vld [vmem:[#allocation9 + $0x10] sm:$0xf]
    %v248 = vld [vmem:[#allocation9 + $0x14] sm:$0xf]
    %v249 = vld [vmem:[#allocation9 + $0x18] sm:$0xf]
    %v250 = vld [vmem:[#allocation9 + $0x1c] sm:$0xf]
    %v251 = vld [vmem:[#allocation9 + $0x20] sm:$0xf]
    %v252 = vld [vmem:[#allocation9 + $0x24] sm:$0xf]
    %v253 = vld [vmem:[#allocation9 + $0x28] sm:$0xf]
    %v254 = vld [vmem:[#allocation9 + $0x2c] sm:$0xf]
    %v255 = vld [vmem:[#allocation9 + $0x30] sm:$0xf]
    %v256 = vld [vmem:[#allocation9 + $0x34] sm:$0xf]
    %v257 = vld [vmem:[#allocation9 + $0x38] sm:$0xf]
    %v258 = vld [vmem:[#allocation9 + $0x3c] sm:$0xf]
    %v259 = vld [vmem:[%s5] sm:$0x1]
    %v261 = vlaneseq
    %v262 = vshrl.u32 %v261, 7
    %v263 = vsub.s32 0, %v262
    %v264 = vrot.slane %v259, %v263
    %v282 = vunpack.c.l.b16 %v243
    %v283 = vunpack.c.l.b16 %v244
    %v284 = vunpack.c.l.b16 %v245
    %v285 = vunpack.c.l.b16 %v246
    %v286 = vunpack.c.l.b16 %v247
    %v287 = vunpack.c.l.b16 %v248
    %v288 = vunpack.c.l.b16 %v249
    %v289 = vunpack.c.l.b16 %v250
    %v290 = vunpack.c.l.b16 %v251
    %v291 = vunpack.c.l.b16 %v252
    %v292 = vunpack.c.l.b16 %v253
    %v293 = vunpack.c.l.b16 %v254
    %v294 = vunpack.c.l.b16 %v255
    %v295 = vunpack.c.l.b16 %v256
    %v296 = vunpack.c.l.b16 %v257
    %v297 = vunpack.c.l.b16 %v258
    %v298 = vpack.c.b16 %v283, %v282
    %v299 = vpack.c.b16 %v285, %v284
    %v300 = vpack.c.b16 %v287, %v286
    %v301 = vpack.c.b16 %v289, %v288
    %v302 = vpack.c.b16 %v291, %v290
    %v303 = vpack.c.b16 %v293, %v292
    %v304 = vpack.c.b16 %v295, %v294
    %v305 = vpack.c.b16 %v297, %v296
    %314 = vmatprep.subr.bf16.mxu0 0
    %315 = vmatpush1.bf16.msra.mxu0 %v298
    %316 = vmatprep.subr.bf16.mxu0 0
    %317 = vmatpush1.bf16.msra.mxu0 %v299
    %318 = vmatprep.subr.bf16.mxu0 0
    %319 = vmatpush1.bf16.msra.mxu0 %v300
    %320 = vmatprep.subr.bf16.mxu0 0
    %321 = vmatpush1.bf16.msra.mxu0 %v301
    %322 = vmatprep.subr.bf16.mxu0 0
    %323 = vmatpush1.bf16.msra.mxu0 %v302
    %324 = vmatprep.subr.bf16.mxu0 0
    %325 = vmatpush1.bf16.msra.mxu0 %v303
    %326 = vmatprep.subr.bf16.mxu0 0
    %327 = vmatpush1.bf16.msra.mxu0 %v304
    %328 = vmatprep.subr.bf16.mxu0 0
    %329 = vmatpush1.bf16.msra.mxu0 %v305
    %330 = vmatprep.subr.bf16.mxu0 0
    %331 = vmatpush1.bf16.msra.mxu0 0
    %332 = vmatprep.subr.bf16.mxu0 0
    %333 = vmatpush1.bf16.msra.mxu0 0
    %334 = vmatprep.subr.bf16.mxu0 0
    %335 = vmatpush1.bf16.msra.mxu0 0
    %336 = vmatprep.subr.bf16.mxu0 0
    %337 = vmatpush1.bf16.msra.mxu0 0
    %338 = vmatprep.subr.bf16.mxu0 0
    %339 = vmatpush1.bf16.msra.mxu0 0
    %340 = vmatprep.subr.bf16.mxu0 0
    %341 = vmatpush1.bf16.msra.mxu0 0
    %342 = vmatprep.subr.bf16.mxu0 0
    %343 = vmatpush1.bf16.msra.mxu0 0
    %344 = vmatprep.subr.bf16.mxu0 0
    %345 = vmatpush1.bf16.msra.mxu0 0
    %346 = vmatprep.mubr.bf16.mxu0 0
    %347 = vmatmul.mubr.bf16.gmra.mrb[0].mxu0 %v242
    %v348 = vpop.f32.mrb[0].mxu0
    %v349 = vadd.f32 %v264, %v348
    %v350 = vpop.f32.mrb[0].mxu0
    %v351 = vpop.f32.mrb[0].mxu0
    %v352 = vpop.f32.mrb[0].mxu0
    %353 = vdwg.mxu0
    %v354 = vmax.f32 %v349, 0.0
    %s355 = sadd.s32 %s224, 198677742
    %v356 = vstv %s355
    %v357 = vxor.u32 %v227, %v356
    %v358 = vshrl.u32 %v357, 16
    %v359 = vxor.u32 %v357, %v358
    %v360 = vmul.u32 %v359, 2146121005
    %v361 = vshrl.u32 %v360, 15
    %v362 = vxor.u32 %v360, %v361
    %v363 = vmul.u32 %v362, 2221713035
    %v364 = vshrl.u32 %v363, 16
    %v365 = vxor.u32 %v363, %v364
    %v366 = vshrl.u32 %v365, 8
    %vm367 = vcmp.lt.s32.totalorder %v366, 15099494
    %v368 = vmul.f32 %v354, 1.1111112
    %v369 = vsel %vm367, %v368, 0.0
    %v370 = vpack.c.bf16 %v369, %v369
    %v371 = vld [vmem:[#allocation10] sm:$0xf]
    %v372 = vld [vmem:[#allocation10 + $0x4] sm:$0xf]
    %v373 = vld [vmem:[#allocation10 + $0x8] sm:$0xf]
    %v374 = vld [vmem:[#allocation10 + $0xc] sm:$0xf]
    %v375 = vld [vmem:[#allocation10 + $0x10] sm:$0xf]
    %v376 = vld [vmem:[#allocation10 + $0x14] sm:$0xf]
    %v377 = vld [vmem:[#allocation10 + $0x18] sm:$0xf]
    %v378 = vld [vmem:[#allocation10 + $0x1c] sm:$0xf]
    %v379 = vld [vmem:[#allocation10 + $0x20] sm:$0xf]
    %v380 = vld [vmem:[#allocation10 + $0x24] sm:$0xf]
    %v381 = vld [vmem:[#allocation10 + $0x28] sm:$0xf]
    %v382 = vld [vmem:[#allocation10 + $0x2c] sm:$0xf]
    %v383 = vld [vmem:[#allocation10 + $0x30] sm:$0xf]
    %v384 = vld [vmem:[#allocation10 + $0x34] sm:$0xf]
    %v385 = vld [vmem:[#allocation10 + $0x38] sm:$0xf]
    %v386 = vld [vmem:[#allocation10 + $0x3c] sm:$0xf]
    %v387 = vld [vmem:[%s7] sm:$0x1]
    %v389 = vlaneseq
    %v390 = vshrl.u32 %v389, 7
    %v391 = vsub.s32 0, %v390
    %v392 = vrot.slane %v387, %v391
    %v410 = vunpack.c.l.b16 %v371
    %v411 = vunpack.c.l.b16 %v372
    %v412 = vunpack.c.l.b16 %v373
    %v413 = vunpack.c.l.b16 %v374
    %v414 = vunpack.c.l.b16 %v375
    %v415 = vunpack.c.l.b16 %v376
    %v416 = vunpack.c.l.b16 %v377
    %v417 = vunpack.c.l.b16 %v378
    %v418 = vunpack.c.l.b16 %v379
    %v419 = vunpack.c.l.b16 %v380
    %v420 = vunpack.c.l.b16 %v381
    %v421 = vunpack.c.l.b16 %v382
    %v422 = vunpack.c.l.b16 %v383
    %v423 = vunpack.c.l.b16 %v384
    %v424 = vunpack.c.l.b16 %v385
    %v425 = vunpack.c.l.b16 %v386
    %v426 = vpack.c.b16 %v411, %v410
    %v427 = vpack.c.b16 %v413, %v412
    %v428 = vpack.c.b16 %v415, %v414
    %v429 = vpack.c.b16 %v417, %v416
    %v430 = vpack.c.b16 %v419, %v418
    %v431 = vpack.c.b16 %v421, %v420
    %v432 = vpack.c.b16 %v423, %v422
    %v433 = vpack.c.b16 %v425, %v424
    %442 = vmatprep.subr.bf16.mxu0 0
    %443 = vmatpush1.bf16.msra.mxu0 %v426
    %444 = vmatprep.subr.bf16.mxu0 0
    %445 = vmatpush1.bf16.msra.mxu0 %v427
    %446 = vmatprep.subr.bf16.mxu0 0
    %447 = vmatpush1.bf16.msra.mxu0 %v428
    %448 = vmatprep.subr.bf16.mxu0 0
    %449 = vmatpush1.bf16.msra.mxu0 %v429
    %450 = vmatprep.subr.bf16.mxu0 0
    %451 = vmatpush1.bf16.msra.mxu0 %v430
    %452 = vmatprep.subr.bf16.mxu0 0
    %453 = vmatpush1.bf16.msra.mxu0 %v431
    %454 = vmatprep.subr.bf16.mxu0 0
    %455 = vmatpush1.bf16.msra.mxu0 %v432
    %456 = vmatprep.subr.bf16.mxu0 0
    %457 = vmatpush1.bf16.msra.mxu0 %v433
    %458 = vmatprep.subr.bf16.mxu0 0
    %459 = vmatpush1.bf16.msra.mxu0 0
    %460 = vmatprep.subr.bf16.mxu0 0
    %461 = vmatpush1.bf16.msra.mxu0 0
    %462 = vmatprep.subr.bf16.mxu0 0
    %463 = vmatpush1.bf16.msra.mxu0 0
    %464 = vmatprep.subr.bf16.mxu0 0
    %465 = vmatpush1.bf16.msra.mxu0 0
    %466 = vmatprep.subr.bf16.mxu0 0
    %467 = vmatpush1.bf16.msra.mxu0 0
    %468 = vmatprep.subr.bf16.mxu0 0
    %469 = vmatpush1.bf16.msra.mxu0 0
    %470 = vmatprep.subr.bf16.mxu0 0
    %471 = vmatpush1.bf16.msra.mxu0 0
    %472 = vmatprep.subr.bf16.mxu0 0
    %473 = vmatpush1.bf16.msra.mxu0 0
    %474 = vmatprep.mubr.bf16.mxu0 0
    %475 = vmatmul.mubr.bf16.gmra.mrb[0].mxu0 %v370
    %v476 = vpop.f32.mrb[0].mxu0
    %v477 = vadd.f32 %v392, %v476
    %v478 = vpop.f32.mrb[0].mxu0
    %v479 = vpop.f32.mrb[0].mxu0
    %v480 = vpop.f32.mrb[0].mxu0
    %481 = vdwg.mxu0
    %v482 = vmax.f32 %v477, 0.0
    %s483 = sadd.s32 %s224, 2445500261
    %v484 = vstv %s483
    %v485 = vxor.u32 %v227, %v484
    %v486 = vshrl.u32 %v485, 16
    %v487 = vxor.u32 %v485, %v486
    %v488 = vmul.u32 %v487, 2146121005
    %v489 = vshrl.u32 %v488, 15
    %v490 = vxor.u32 %v488, %v489
    %v491 = vmul.u32 %v490, 2221713035
    %v492 = vshrl.u32 %v491, 16
    %v493 = vxor.u32 %v491, %v492
    %v494 = vshrl.u32 %v493, 8
    %vm495 = vcmp.lt.s32.totalorder %v494, 15099494
    %v496 = vmul.f32 %v482, 1.1111112
    %v497 = vsel %vm495, %v496, 0.0
    %v498 = vpack.c.bf16 %v497, %v497
    %v499 = vld [vmem:[#allocation12] sm:$0xf]
    %v500 = vld [vmem:[#allocation12 + $0x4] sm:$0xf]
    %v501 = vld [vmem:[#allocation12 + $0x8] sm:$0xf]
    %v502 = vld [vmem:[#allocation12 + $0xc] sm:$0xf]
    %v503 = vld [vmem:[#allocation12 + $0x10] sm:$0xf]
    %v504 = vld [vmem:[#allocation12 + $0x14] sm:$0xf]
    %v505 = vld [vmem:[#allocation12 + $0x18] sm:$0xf]
    %v506 = vld [vmem:[#allocation12 + $0x1c] sm:$0xf]
    %v507 = vld [vmem:[#allocation12 + $0x20] sm:$0xf]
    %v508 = vld [vmem:[#allocation12 + $0x24] sm:$0xf]
    %v509 = vld [vmem:[#allocation12 + $0x28] sm:$0xf]
    %v510 = vld [vmem:[#allocation12 + $0x2c] sm:$0xf]
    %v511 = vld [vmem:[#allocation12 + $0x30] sm:$0xf]
    %v512 = vld [vmem:[#allocation12 + $0x34] sm:$0xf]
    %v513 = vld [vmem:[#allocation12 + $0x38] sm:$0xf]
    %v514 = vld [vmem:[#allocation12 + $0x3c] sm:$0xf]
    %v515 = vld [vmem:[%s9] sm:$0x1]
    %v517 = vlaneseq
    %v518 = vshrl.u32 %v517, 7
    %v519 = vsub.s32 0, %v518
    %v520 = vrot.slane %v515, %v519
    %v538 = vunpack.c.l.b16 %v499
    %v539 = vunpack.c.l.b16 %v500
    %v540 = vunpack.c.l.b16 %v501
    %v541 = vunpack.c.l.b16 %v502
    %v542 = vunpack.c.l.b16 %v503
    %v543 = vunpack.c.l.b16 %v504
    %v544 = vunpack.c.l.b16 %v505
    %v545 = vunpack.c.l.b16 %v506
    %v546 = vunpack.c.l.b16 %v507
    %v547 = vunpack.c.l.b16 %v508
    %v548 = vunpack.c.l.b16 %v509
    %v549 = vunpack.c.l.b16 %v510
    %v550 = vunpack.c.l.b16 %v511
    %v551 = vunpack.c.l.b16 %v512
    %v552 = vunpack.c.l.b16 %v513
    %v553 = vunpack.c.l.b16 %v514
    %v554 = vpack.c.b16 %v539, %v538
    %v555 = vpack.c.b16 %v541, %v540
    %v556 = vpack.c.b16 %v543, %v542
    %v557 = vpack.c.b16 %v545, %v544
    %v558 = vpack.c.b16 %v547, %v546
    %v559 = vpack.c.b16 %v549, %v548
    %v560 = vpack.c.b16 %v551, %v550
    %v561 = vpack.c.b16 %v553, %v552
    %570 = vmatprep.subr.bf16.mxu0 0
    %571 = vmatpush1.bf16.msra.mxu0 %v554
    %572 = vmatprep.subr.bf16.mxu0 0
    %573 = vmatpush1.bf16.msra.mxu0 %v555
    %574 = vmatprep.subr.bf16.mxu0 0
    %575 = vmatpush1.bf16.msra.mxu0 %v556
    %576 = vmatprep.subr.bf16.mxu0 0
    %577 = vmatpush1.bf16.msra.mxu0 %v557
    %578 = vmatprep.subr.bf16.mxu0 0
    %579 = vmatpush1.bf16.msra.mxu0 %v558
    %580 = vmatprep.subr.bf16.mxu0 0
    %581 = vmatpush1.bf16.msra.mxu0 %v559
    %582 = vmatprep.subr.bf16.mxu0 0
    %583 = vmatpush1.bf16.msra.mxu0 %v560
    %584 = vmatprep.subr.bf16.mxu0 0
    %585 = vmatpush1.bf16.msra.mxu0 %v561
    %586 = vmatprep.subr.bf16.mxu0 0
    %587 = vmatpush1.bf16.msra.mxu0 0
    %588 = vmatprep.subr.bf16.mxu0 0
    %589 = vmatpush1.bf16.msra.mxu0 0
    %590 = vmatprep.subr.bf16.mxu0 0
    %591 = vmatpush1.bf16.msra.mxu0 0
    %592 = vmatprep.subr.bf16.mxu0 0
    %593 = vmatpush1.bf16.msra.mxu0 0
    %594 = vmatprep.subr.bf16.mxu0 0
    %595 = vmatpush1.bf16.msra.mxu0 0
    %596 = vmatprep.subr.bf16.mxu0 0
    %597 = vmatpush1.bf16.msra.mxu0 0
    %598 = vmatprep.subr.bf16.mxu0 0
    %599 = vmatpush1.bf16.msra.mxu0 0
    %600 = vmatprep.subr.bf16.mxu0 0
    %601 = vmatpush1.bf16.msra.mxu0 0
    %602 = vmatprep.mubr.bf16.mxu0 0
    %603 = vmatmul.mubr.bf16.gmra.mrb[0].mxu0 %v498
    %v604 = vpop.f32.mrb[0].mxu0
    %v605 = vadd.f32 %v520, %v604
    %v606 = vpop.f32.mrb[0].mxu0
    %v607 = vpop.f32.mrb[0].mxu0
    %v608 = vpop.f32.mrb[0].mxu0
    %609 = vdwg.mxu0
    %610 = vst [vmem:[#allocation13] sm:$0xff] %v605
    // Predicated region
    $region58: #{tpu_custom_call.1} parent=1 // pred_check
      _
    $region59: #{tpu_custom_call.1} parent=1 // pred_check_branch
      %612 = sbr.rel (0) target = $region61
    $region60: #{tpu_custom_call.1} parent=1 // pred_region
      %s614 = ssub.s32 128, 128
      %615 = vsyncadd [#allocation6], %s614
      %s617 = sshll.u32 [#allocation13], 4
      %s618 = int_to_ptr.vmem [resolvable:$true] %s617
      %620 = dma.vmem_to_hbm [thread:$0]  %s618, 128, %s10, [#allocation6]
    $region61: #{tpu_custom_call.1} parent=1 // pred_fallthru
      _
    // Predicated region
    $region62: #{tpu_custom_call.1} parent=1 // pred_check
      _
    $region63: #{tpu_custom_call.1} parent=1 // pred_check_branch
      %622 = sbr.rel (0) target = $region65
    $region64: #{tpu_custom_call.1} parent=1 // pred_region
      %623 = dma.done [#allocation6], 128
    $region65: #{tpu_custom_call.1} parent=1 // pred_fallthru
      _
    %624 = vsyncpa [#allocation5], 1
    %625 = vsyncpa [#allocation8], 1
    %626 = vsyncpa [#allocation11], 1
    %627 = vsyncpa [#allocation6], 1

</llo_original>
